<compile_context>
chip_gen: v7x
topology: tpu7x:2x2x1
jax: 0.10.0
libtpu: 0.0.40
codegen_flags: <defaults>
</compile_context>

<pallas_src>
import functools

import jax
import jax.numpy as jnp
from jax.experimental import pallas as pl
from jax.experimental.pallas import tpu as pltpu


def linear_vpu_kernel(w_ref, x_ref, o_ref):
    # w_ref: SMEM (IN=2,) scalars (scalar-prefetch operand)
    # x_ref: VMEM (2, Bt)   -- batch on the lane axis
    # o_ref: VMEM (1, Bt)
    w0 = w_ref[0]
    w1 = w_ref[1]
    # y = W @ x  for W of shape (1, 2): sublane slices are cheap, lane-dense math.
    o_ref[...] = x_ref[0:1, :] * w0 + x_ref[1:2, :] * w1


@functools.partial(jax.jit, static_argnames=("block_b",))
def simple_model_forward(x, weight, *, block_b=512):
    """y = x @ weight.T  (nn.Linear(2, 1, bias=False) forward).

    x:      (B, 2) float32
    weight: (1, 2) float32  (PyTorch (out_features, in_features) layout)
    returns (B, 1) float32
    """
    B, IN = x.shape
    OUT, IN_w = weight.shape
    assert IN == IN_w == 2 and OUT == 1

    # Lane-dense layout: batch on the lane (last) axis.
    xt = x.T                              # (2, B)
    # Pad batch up to a multiple of the lane tile (>= 128).
    bt = min(block_b, 128 * pl.cdiv(B, 128))
    bt = max(bt, 128)
    Bp = bt * pl.cdiv(B, bt)
    if Bp != B:
        xt = jnp.pad(xt, ((0, 0), (0, Bp - B)))

    w_flat = weight.reshape(IN)           # (2,) — no transpose needed

    cost = pl.CostEstimate(
        flops=2 * B * IN * OUT,
        transcendentals=0,
        bytes_accessed=(Bp * IN + IN * OUT + Bp * OUT) * 4,
    )

    yt = pl.pallas_call(
        linear_vpu_kernel,
        out_shape=jax.ShapeDtypeStruct((OUT, Bp), x.dtype),
        grid_spec=pltpu.PrefetchScalarGridSpec(
            num_scalar_prefetch=1,        # weight -> SMEM
            grid=(Bp // bt,),
            # index_maps receive the prefetch ref as a trailing positional arg.
            in_specs=[pl.BlockSpec((IN, bt), lambda i, w: (0, i))],
            out_specs=pl.BlockSpec((OUT, bt), lambda i, w: (0, i)),
        ),
        compiler_params=pltpu.CompilerParams(
            # Batch tiles are independent -> shard across TCs on v7x.
            dimension_semantics=("parallel",),
        ),
        cost_estimate=cost,
    )(w_flat, xt)

    # Back to nn.Linear's (B, 1) output layout; drop the lane padding.
    return yt[:, :B].T


if __name__ == "__main__":
    key = jax.random.PRNGKey(0)
    k_x, k_w = jax.random.split(key)

    # Small shapes consistent with nn.Linear(2, 1): batch=8, in_features=2.
    x = jax.random.normal(k_x, (8, 2), dtype=jnp.float32)
    # Deterministic init mimicking nn.Linear's uniform(-1/sqrt(in), 1/sqrt(in)).
    bound = 1.0 / jnp.sqrt(2.0)
    weight = jax.random.uniform(
        k_w, (1, 2), dtype=jnp.float32, minval=-bound, maxval=bound
    )

    y = simple_model_forward(x, weight)
    jax.block_until_ready(y)

    # Correctness check against plain-JAX reference of the PyTorch semantics.
    y_ref = x @ weight.T
    assert y.shape == (8, 1)
    assert jnp.allclose(y, y_ref, atol=1e-5, rtol=1e-5)

    print("KERNEL_OK")
</pallas_src>

<mosaic_0001>
module attributes {stable_mosaic.version = 11 : i64} {
  func.func @linear_vpu_kernel(%arg0: i32, %arg1: memref<2xf32, #tpu.memory_space<smem>>, %arg2: memref<2x128xf32, #tpu.memory_space<vmem>>, %arg3: memref<1x128xf32, #tpu.memory_space<vmem>>) attributes {dimension_semantics = [#tpu.dimension_semantics<parallel>], iteration_bounds = array<i64: 1>, scalar_prefetch = 1 : i64, scratch_operands = 0 : i64, tpu.core_type = #tpu.core_type<tc>, window_params = [{transform_indices = @transform_0, window_bounds = array<i64: 2, 128>}, {transform_indices = @transform_1, window_bounds = array<i64: 1, 128>}]} {
    %c0 = arith.constant 0 : index
    %0 = memref.load %arg1[%c0] : memref<2xf32, #tpu.memory_space<smem>>
    %c1 = arith.constant 1 : index
    %1 = memref.load %arg1[%c1] : memref<2xf32, #tpu.memory_space<smem>>
    %c0_0 = arith.constant 0 : index
    %c0_1 = arith.constant 0 : index
    %2 = vector.load %arg2[%c0_0, %c0_1] : memref<2x128xf32, #tpu.memory_space<vmem>>, vector<1x128xf32>
    %3 = vector.broadcast %0 : f32 to vector<1x128xf32>
    %4 = arith.mulf %2, %3 : vector<1x128xf32>
    %c1_2 = arith.constant 1 : index
    %c0_3 = arith.constant 0 : index
    %5 = vector.load %arg2[%c1_2, %c0_3] : memref<2x128xf32, #tpu.memory_space<vmem>>, vector<1x128xf32>
    %6 = vector.broadcast %1 : f32 to vector<1x128xf32>
    %7 = arith.mulf %5, %6 : vector<1x128xf32>
    %8 = arith.addf %4, %7 : vector<1x128xf32>
    %c0_4 = arith.constant 0 : index
    %c0_5 = arith.constant 0 : index
    %9 = vector.load %arg3[%c0_4, %c0_5] : memref<1x128xf32, #tpu.memory_space<vmem>>, vector<1x128xf32>
    tpu.vector_store %arg3[%c0_4, %c0_5], %8 {strides = array<i32>} : memref<1x128xf32, #tpu.memory_space<vmem>>, vector<1x128xf32>,
    return
  }
  func.func @transform_0(%arg0: i32, %arg1: memref<2xf32, #tpu.memory_space<smem>>) -> (i32, i32) {
    %c0_i32 = arith.constant 0 : i32
    %c0_i32_0 = arith.constant 0 : i32
    return %c0_i32, %arg0 : i32, i32
  }
  func.func @transform_1(%arg0: i32, %arg1: memref<2xf32, #tpu.memory_space<smem>>) -> (i32, i32) {
    %c0_i32 = arith.constant 0 : i32
    %c0_i32_0 = arith.constant 0 : i32
    return %c0_i32, %arg0 : i32, i32
  }
}

</mosaic_0001>

<llo_original>
// kernel: simple_model_forward.1
$region0: #{simple_model_forward.1}
  #allocation0 [shape = 'u32[]', space=smem, size = 0x4, offset = 0x4, fixed_abs, tag = 'smem constant byte address 0x4 - core index']
  #allocation1 [shape = 'u32[144,128]{1,0:T(1,128)}', space=vmem, size = 0x12000, scoped, tag = 'internal scratch']
  #allocation2 [shape = 's32[1]{0}', space=sflag, size = 0x4, scoped, tag = 'scoped memory for simple_model_forward.1']
  #allocation3 [shape = 'u8[512]{0}', space=smem, size = 0x200, scoped, tag = 'prefetched SMEM operand 0']
  %s0 = inlined_call_operand.vmem [shape: f32[2], index: 0, kind: input, shape index: {}]
  %s1 = inlined_call_operand.vmem [shape: f32[2,128], index: 1, kind: input, shape index: {}]
  %s2 = inlined_call_operand.vmem [shape: f32[1,128], index: 2, kind: output, shape index: {}]
  %s3 = sld [smem:[#allocation0]]
  $region14: #{simple_model_forward.1} parent=0
    _
  %s5 = ssub.s32 1, %s3
  %s6 = scalar_select 0, %s5, %s3
  %s7 = sshll.u32 %s0, 4
  %s8 = int_to_ptr.vmem [resolvable:$true] %s7
  %10 = dma.vmem_to_smem %s8, 16, [#allocation3], [#allocation2]
  %11 = dma.done [#allocation2], 16
  %12 = sfence
  // Predicated region
  $region2: #{simple_model_forward.1} parent=0 // pred_check
    _
  $region3: #{simple_model_forward.1} parent=0 // pred_check_branch
    %14 = sbr.rel (0) target = $region5
  $region4: #{simple_model_forward.1} parent=0 // pred_region
    _
  $region5: #{simple_model_forward.1} parent=0 // pred_fallthru
    _
  %s15 = sld [smem:[#allocation3]]
  %s16 = sld [smem:[#allocation3 + $0x1]]
  %v17 = vld [vmem:[%s1] sm:$0x1]
  %v18 = vstv %s15
  %v19 = vmul.f32 %v17, %v18
  %v20 = vld [vmem:[%s1 + $0x1] sm:$0x1]
  %v21 = vstv %s16
  %v22 = vmul.f32 %v20, %v21
  %v23 = vadd.f32 %v19, %v22
  %24 = vst [vmem:[%s2] sm:$0x1] %v23
  // Predicated region
  $region6: #{simple_model_forward.1} parent=0 // pred_check
    _
  $region7: #{simple_model_forward.1} parent=0 // pred_check_branch
    %26 = sbr.rel (0) target = $region9
  $region8: #{simple_model_forward.1} parent=0 // pred_region
    _
  $region9: #{simple_model_forward.1} parent=0 // pred_fallthru
    _
  // Predicated region
  $region10: #{simple_model_forward.1} parent=0 // pred_check
    _
  $region11: #{simple_model_forward.1} parent=0 // pred_check_branch
    %28 = sbr.rel (0) target = $region13
  $region12: #{simple_model_forward.1} parent=0 // pred_region
    _
  $region13: #{simple_model_forward.1} parent=0 // pred_fallthru
    _

</llo_original>
